<compile_context>
chip_gen: v6e
topology: v6e:2x2x1
jax: 0.10.0
libtpu: 0.0.40
codegen_flags: <defaults>
</compile_context>

<pallas_src>
import jax
import jax.numpy as jnp
from jax import lax
from jax.experimental import pallas as pl
from jax.experimental.pallas import tpu as pltpu  # noqa: F401  (kept for TPU-specific tuning hooks)


def _mlp_kernel(x_ref, w1_ref, b1_ref, o_ref):
    # x: (B, Fin) f32; w1: (Fout, Fin) f32 in torch nn.Linear layout.
    # Contract x's dim 1 with w1's dim 1 (y = x @ w1.T): the MXU consumes
    # either operand orientation via dimension_numbers, so no transpose /
    # relayout DMA is needed anywhere.
    y = lax.dot_general(
        x_ref[...],
        w1_ref[...],
        dimension_numbers=(((1,), (1,)), ((), ())),
        preferred_element_type=jnp.float32,
    )
    # Bias: (1, Fout) broadcasts across the sublane (batch) axis in the add.
    o_ref[...] = (y + b1_ref[...].astype(jnp.float32)).astype(o_ref.dtype)


def _mlp_forward_pallas(x, w1, b1):
    """x: (B, Fin), w1: (Fout, Fin) (torch layout), b1: (Fout,) -> (y, y)."""
    B, Fin = x.shape
    Fout = w1.shape[0]
    b1_2d = b1.reshape(1, Fout)  # keep refs 2D for TPU-friendly layout

    y = pl.pallas_call(
        _mlp_kernel,
        out_shape=jax.ShapeDtypeStruct((B, Fout), x.dtype),
        # Tiny shapes: each operand is one full-array block
        # (block_shape == full array dims satisfies the (8,128) rule).
        in_specs=[
            pl.BlockSpec((B, Fin), lambda: (0, 0)),
            pl.BlockSpec((Fout, Fin), lambda: (0, 0)),
            pl.BlockSpec((1, Fout), lambda: (0, 0)),
        ],
        out_specs=pl.BlockSpec((B, Fout), lambda: (0, 0)),
    )(x, w1, b1_2d)

    # forward() returns the SAME linear1 output twice — alias at the JAX
    # level so the kernel only writes (and DMAs) it once.
    return y, y


def _mlp_forward_xla(x, w1, b1):
    # Fused-XLA path for overhead-bound tiny shapes (per perf review).
    y = x @ w1.T + b1
    return y, y


# jit so the reshape + custom call (or the fused matmul) are one dispatch.
mlp_forward_pallas = jax.jit(_mlp_forward_pallas)
mlp_forward_xla = jax.jit(_mlp_forward_xla)


def mlp_forward(x, w1, b1):
    """Size-threshold dispatch: plain fused XLA below ~8*128 output elements
    (pure launch overhead regime), Pallas kernel above."""
    B = x.shape[0]
    Fout = w1.shape[0]
    if B * Fout >= 8 * 128:
        return mlp_forward_pallas(x, w1, b1)
    return mlp_forward_xla(x, w1, b1)


if __name__ == "__main__":
    key = jax.random.PRNGKey(0)
    kx, kw1, kb1, kw2, kb2 = jax.random.split(key, 5)

    B, Fin, Fout = 8, 4, 4
    bound = 1.0 / (Fin ** 0.5)  # matches torch.nn.Linear default init range

    x = jax.random.normal(kx, (B, Fin), dtype=jnp.float32)
    w1 = jax.random.uniform(kw1, (Fout, Fin), minval=-bound, maxval=bound,
                            dtype=jnp.float32)
    b1 = jax.random.uniform(kb1, (Fout,), minval=-bound, maxval=bound,
                            dtype=jnp.float32)
    # linear2 params (unused in forward, kept for parity with __init__)
    w2 = jax.random.uniform(kw2, (Fout, Fin), minval=-bound, maxval=bound,
                            dtype=jnp.float32)
    b2 = jax.random.uniform(kb2, (Fout,), minval=-bound, maxval=bound,
                            dtype=jnp.float32)

    # Exercise the Pallas kernel explicitly (the dispatcher would pick the
    # fused-XLA path at this tiny size, per the perf review).
    y1, y2 = mlp_forward_pallas(x, w1, b1)
    jax.block_until_ready((y1, y2))

    # Correctness check against plain-JAX reference.
    ref = x @ w1.T + b1
    assert jnp.allclose(y1, ref, atol=1e-5), "output 1 mismatch"
    assert jnp.allclose(y2, ref, atol=1e-5), "output 2 mismatch"
    assert jnp.array_equal(y1, y2), "the two outputs must be identical"

    # The production dispatcher (fused-XLA path at this size) must agree too.
    z1, z2 = mlp_forward(x, w1, b1)
    jax.block_until_ready((z1, z2))
    assert jnp.allclose(z1, ref, atol=1e-5), "dispatcher output mismatch"

    print("KERNEL_OK")
</pallas_src>

<mosaic_0001>
module attributes {stable_mosaic.version = 11 : i64} {
  func.func @_mlp_kernel(%arg0: memref<8x4xf32, #tpu.memory_space<vmem>>, %arg1: memref<4x4xf32, #tpu.memory_space<vmem>>, %arg2: memref<1x4xf32, #tpu.memory_space<vmem>>, %arg3: memref<8x4xf32, #tpu.memory_space<vmem>>) attributes {dimension_semantics = [], scalar_prefetch = 0 : i64, scratch_operands = 0 : i64, tpu.core_type = #tpu.core_type<tc>} {
    %c0 = arith.constant 0 : index
    %c0_0 = arith.constant 0 : index
    %0 = vector.load %arg0[%c0, %c0_0] : memref<8x4xf32, #tpu.memory_space<vmem>>, vector<8x4xf32>
    %c0_1 = arith.constant 0 : index
    %c0_2 = arith.constant 0 : index
    %1 = vector.load %arg1[%c0_1, %c0_2] : memref<4x4xf32, #tpu.memory_space<vmem>>, vector<4x4xf32>
    %cst = arith.constant dense<0.000000e+00> : vector<8x4xf32>
    %2 = tpu.matmul %0, %1, %cst {dimension_numbers = #tpu.dot_dimension_numbers<[1], [1], [0], [0], [0, 0, 1, 0], [], []>} : vector<8x4xf32>, vector<4x4xf32>, vector<8x4xf32> -> vector<8x4xf32>
    %c0_3 = arith.constant 0 : index
    %c0_4 = arith.constant 0 : index
    %3 = vector.load %arg2[%c0_3, %c0_4] : memref<1x4xf32, #tpu.memory_space<vmem>>, vector<1x4xf32>
    %4 = vector.broadcast %3 : vector<1x4xf32> to vector<8x4xf32>
    %5 = arith.addf %2, %4 : vector<8x4xf32>
    %c0_5 = arith.constant 0 : index
    %c0_6 = arith.constant 0 : index
    %6 = vector.load %arg3[%c0_5, %c0_6] : memref<8x4xf32, #tpu.memory_space<vmem>>, vector<8x4xf32>
    tpu.vector_store %arg3[%c0_5, %c0_6], %5 {strides = array<i32>} : memref<8x4xf32, #tpu.memory_space<vmem>>, vector<8x4xf32>,
    return
  }
}

</mosaic_0001>

<llo_original>
// kernel: _mlp_forward_pallas.1
$region0: #{_mlp_forward_pallas.1}
  #allocation0 [shape = 'u32[]', space=smem, size = 0x4, offset = 0x4, fixed_abs, tag = 'smem constant byte address 0x4 - core index']
  #allocation1 [shape = 'u32[144,128]{1,0:T(1,128)}', space=vmem, size = 0x12000, scoped, tag = 'internal scratch']
  %s0 = inlined_call_operand.vmem [shape: f32[8,4], index: 0, kind: input, shape index: {}]
  %s1 = inlined_call_operand.vmem [shape: f32[4,4], index: 1, kind: input, shape index: {}]
  %s2 = inlined_call_operand.vmem [shape: f32[1,4], index: 2, kind: input, shape index: {}]
  %s3 = inlined_call_operand.vmem [shape: f32[8,4], index: 3, kind: output, shape index: {}]
  %s4 = sld [smem:[#allocation0]]
  $region22: #{_mlp_forward_pallas.1} parent=0
    _
  %s6 = ssub.s32 1, %s4
  %s7 = scalar_select 0, %s6, %s4
  // Predicated region
  $region2: #{_mlp_forward_pallas.1} parent=0 // pred_check
    _
  $region3: #{_mlp_forward_pallas.1} parent=0 // pred_check_branch
    %9 = sbr.rel (0) target = $region5
  $region4: #{_mlp_forward_pallas.1} parent=0 // pred_region
    _
  $region5: #{_mlp_forward_pallas.1} parent=0 // pred_fallthru
    _
  // Predicated region
  $region6: #{_mlp_forward_pallas.1} parent=0 // pred_check
    _
  $region7: #{_mlp_forward_pallas.1} parent=0 // pred_check_branch
    %11 = sbr.rel (0) target = $region9
  $region8: #{_mlp_forward_pallas.1} parent=0 // pred_region
    _
  $region9: #{_mlp_forward_pallas.1} parent=0 // pred_fallthru
    _
  // Predicated region
  $region10: #{_mlp_forward_pallas.1} parent=0 // pred_check
    _
  $region11: #{_mlp_forward_pallas.1} parent=0 // pred_check_branch
    %13 = sbr.rel (0) target = $region13
  $region12: #{_mlp_forward_pallas.1} parent=0 // pred_region
    _
  $region13: #{_mlp_forward_pallas.1} parent=0 // pred_fallthru
    _
  %v14 = vld [vmem:[%s0] sm:$0xff]
  %v15 = vld [vmem:[%s1] sm:$0xf]
  %v16 = vld [vmem:[%s2] sm:$0x1]
  %v18 = vlaneseq
  %v19 = vshrl.u32 %v18, 7
  %v20 = vsub.s32 0, %v19
  %v21 = vrot.slane %v16, %v20
  %vm23 = vcmask 31744
  %v25 = vsel %vm23, %v14, 0
  %v28 = vsel %vm23, %v15, 0
  %30 = vmatprep.subr.mxu0 0.0
  %31 = vmatpush1.xpose.msra.mxu0 0.0
  %32 = vmatprep.subr.mxu0 0.0
  %33 = vmatpush1.xpose.msra.mxu0 0.0
  %34 = vmatprep.subr.mxu0 0.0
  %35 = vmatpush1.xpose.msra.mxu0 0.0
  %36 = vmatprep.subr.mxu0 0.0
  %37 = vmatpush1.xpose.msra.mxu0 0.0
  %38 = vmatprep.subr.mxu0 0.0
  %39 = vmatpush1.xpose.msra.mxu0 0.0
  %40 = vmatprep.subr.mxu0 0.0
  %41 = vmatpush1.xpose.msra.mxu0 0.0
  %42 = vmatprep.subr.mxu0 0.0
  %43 = vmatpush1.xpose.msra.mxu0 0.0
  %44 = vmatprep.subr.mxu0 0.0
  %45 = vmatpush1.xpose.msra.mxu0 0.0
  %46 = vmatprep.subr.mxu0 0.0
  %47 = vmatpush1.xpose.msra.mxu0 0.0
  %48 = vmatprep.subr.mxu0 0.0
  %49 = vmatpush1.xpose.msra.mxu0 0.0
  %50 = vmatprep.subr.mxu0 0.0
  %51 = vmatpush1.xpose.msra.mxu0 0.0
  %52 = vmatprep.subr.mxu0 0.0
  %53 = vmatpush1.xpose.msra.mxu0 0.0
  %54 = vmatprep.subr.mxu0 0.0
  %55 = vmatpush1.xpose.msra.mxu0 0.0
  %56 = vmatprep.subr.mxu0 0.0
  %57 = vmatpush1.xpose.msra.mxu0 0.0
  %58 = vmatprep.subr.mxu0 0.0
  %59 = vmatpush1.xpose.msra.mxu0 0.0
  %60 = vmatprep.subr.mxu0 0.0
  %61 = vmatpush1.xpose.msra.mxu0 %v28
  %62 = vmatprep.subr.mxu0 0.0
  %63 = vmatpush2.xpose.msra.mxu0 0.0
  %64 = vmatprep.subr.mxu0 0.0
  %65 = vmatpush2.xpose.msra.mxu0 0.0
  %66 = vmatprep.subr.mxu0 0.0
  %67 = vmatpush2.xpose.msra.mxu0 0.0
  %68 = vmatprep.subr.mxu0 0.0
  %69 = vmatpush2.xpose.msra.mxu0 0.0
  %70 = vmatprep.subr.mxu0 0.0
  %71 = vmatpush2.xpose.msra.mxu0 0.0
  %72 = vmatprep.subr.mxu0 0.0
  %73 = vmatpush2.xpose.msra.mxu0 0.0
  %74 = vmatprep.subr.mxu0 0.0
  %75 = vmatpush2.xpose.msra.mxu0 0.0
  %76 = vmatprep.subr.mxu0 0.0
  %77 = vmatpush2.xpose.msra.mxu0 0.0
  %78 = vmatprep.subr.mxu0 0.0
  %79 = vmatpush2.xpose.msra.mxu0 0.0
  %80 = vmatprep.subr.mxu0 0.0
  %81 = vmatpush2.xpose.msra.mxu0 0.0
  %82 = vmatprep.subr.mxu0 0.0
  %83 = vmatpush2.xpose.msra.mxu0 0.0
  %84 = vmatprep.subr.mxu0 0.0
  %85 = vmatpush2.xpose.msra.mxu0 0.0
  %86 = vmatprep.subr.mxu0 0.0
  %87 = vmatpush2.xpose.msra.mxu0 0.0
  %88 = vmatprep.subr.mxu0 0.0
  %89 = vmatpush2.xpose.msra.mxu0 0.0
  %90 = vmatprep.subr.mxu0 0.0
  %91 = vmatpush2.xpose.msra.mxu0 0.0
  %92 = vmatprep.subr.mxu0 0.0
  %93 = vmatpush2.xpose.msra.mxu0 0.0
  %94 = vmatprep.mubr.f32.mxu0 0.0
  %95 = vmatmul.mubr.f32.gmra.mxu0 %v25
  %v96 = vpop.f32.mrf.mxu0
  %v97 = vadd.f32 %v21, %v96
  %v98 = vpop.f32.mrf.mxu0
  %99 = vdwg.mxu0
  %100 = vst.msk [vmem:[%s3] sm:$0xff] %vm23, %v97
  // Predicated region
  $region14: #{_mlp_forward_pallas.1} parent=0 // pred_check
    _
  $region15: #{_mlp_forward_pallas.1} parent=0 // pred_check_branch
    %102 = sbr.rel (0) target = $region17
  $region16: #{_mlp_forward_pallas.1} parent=0 // pred_region
    _
  $region17: #{_mlp_forward_pallas.1} parent=0 // pred_fallthru
    _
  // Predicated region
  $region18: #{_mlp_forward_pallas.1} parent=0 // pred_check
    _
  $region19: #{_mlp_forward_pallas.1} parent=0 // pred_check_branch
    %104 = sbr.rel (0) target = $region21
  $region20: #{_mlp_forward_pallas.1} parent=0 // pred_region
    _
  $region21: #{_mlp_forward_pallas.1} parent=0 // pred_fallthru
    _

</llo_original>
